<compile_context>
chip_gen: v6e
topology: v6e:2x2x1
jax: 0.10.0
libtpu: 0.0.40
codegen_flags: <defaults>
</compile_context>

<pallas_src>
import jax
import jax.numpy as jnp
from jax.experimental import pallas as pl
from jax.experimental.pallas import tpu as pltpu


def _round_up(x, m):
    return (x + m - 1) // m * m


def _qnet_kernel(x_ref, w1_ref, b1_ref, w2_ref, b2_ref, o_ref):
    # Linear1 on the MXU with f32 accumulation.  K=11 / N=32 are handled by
    # the MXU's internal zero padding; no HBM-side padding required.
    h = jnp.dot(x_ref[...], w1_ref[...], preferred_element_type=jnp.float32)
    h = jnp.maximum(h + b1_ref[...], 0.0)          # bias + ReLU in f32 (VPU)
    # Linear2 on the MXU (operands in the weight dtype, f32 accumulation).
    y = jnp.dot(h.astype(w2_ref.dtype), w2_ref[...],
                preferred_element_type=jnp.float32)
    o_ref[...] = (y + b2_ref[...]).astype(o_ref.dtype)


def linear_qnet_forward(x, w1, b1, w2, b2, *, param_dtype=None,
                        block_b=2048, min_pallas_batch=128,
                        force_pallas=False):
    """Fused forward: relu(x @ w1 + b1) @ w2 + b2  (== Linear_QNet.forward).

    x  : (B, in)      w1 : (in, hidden)   b1 : (hidden,)
    w2 : (hidden, out)                    b2 : (out,)
    param_dtype : optional matmul-operand dtype (jnp.bfloat16 recommended on
                  v6e/v7x; bias/ReLU/accumulation stay f32 in-kernel).
    """
    B, in_f = x.shape
    hid_f = w1.shape[1]
    out_f = w2.shape[1]
    out_dtype = x.dtype

    b1_2d = b1.reshape(1, hid_f).astype(jnp.float32)
    b2_2d = b2.reshape(1, out_f).astype(jnp.float32)

    xm, w1m, w2m = x, w1, w2
    if param_dtype is not None:
        xm = xm.astype(param_dtype)
        w1m = w1m.astype(param_dtype)
        w2m = w2m.astype(param_dtype)

    # Tiny standalone batches: kernel launch + DMA latency dominate; a custom
    # kernel cannot beat XLA's fused expression here.
    if B < min_pallas_batch and not force_pallas:
        h = jnp.maximum(
            jnp.dot(xm, w1m, preferred_element_type=jnp.float32) + b1_2d, 0.0)
        y = jnp.dot(h.astype(w2m.dtype), w2m,
                    preferred_element_type=jnp.float32) + b2_2d
        return y.astype(out_dtype)

    # ---- Batch tiling: only the batch (sublane) axis is ever padded. -------
    if B <= 256:
        tile_b = _round_up(max(B, 1), 8)            # single grid step
    elif B <= block_b:
        # >= 2 "parallel" grid steps so v7x's second TensorCore gets work.
        tile_b = _round_up((B + 1) // 2, 8)
    else:
        tile_b = block_b
    b_pad = _round_up(B, tile_b)

    if b_pad != B:
        # Row-only padding; feature dims (11 / 32 / 3) keep their true sizes.
        xm = jnp.pad(xm, ((0, b_pad - B), (0, 0)))

    grid = (b_pad // tile_b,)

    # Real-dim cost estimate (memory-bound kernel; do not inflate FLOPs).
    flops = 2 * b_pad * (in_f * hid_f + hid_f * out_f)
    bytes_accessed = int(
        xm.size * xm.dtype.itemsize
        + w1m.size * w1m.dtype.itemsize
        + w2m.size * w2m.dtype.itemsize
        + b1_2d.size * 4 + b2_2d.size * 4
        + b_pad * out_f * jnp.dtype(out_dtype).itemsize)

    out_padded = pl.pallas_call(
        _qnet_kernel,
        out_shape=jax.ShapeDtypeStruct((b_pad, out_f), out_dtype),
        grid=grid,
        in_specs=[
            # x: batch-tiled; last block dim == full array dim (no lane padding in HBM).
            pl.BlockSpec((tile_b, in_f), lambda i: (i, 0)),
            # Weights / biases: constant index_map -> resident in VMEM across
            # all grid steps (never re-DMA'd).
            pl.BlockSpec((in_f, hid_f), lambda i: (0, 0)),
            pl.BlockSpec((1, hid_f), lambda i: (0, 0)),
            pl.BlockSpec((hid_f, out_f), lambda i: (0, 0)),
            pl.BlockSpec((1, out_f), lambda i: (0, 0)),
        ],
        # Output: (tile_b, 3) full-feature-dim block; narrow stores are a VMEM
        # store-slot cost only -- HBM writeback is 42x smaller than if padded.
        out_specs=pl.BlockSpec((tile_b, out_f), lambda i: (i, 0)),
        compiler_params=pltpu.CompilerParams(
            dimension_semantics=("parallel",)),     # shard batch across TCs (v7x)
        cost_estimate=pl.CostEstimate(
            flops=flops, transcendentals=0, bytes_accessed=bytes_accessed),
    )(xm, w1m, b1_2d, w2m, b2_2d)

    # Padded batch rows are NOT zero (= relu(b1) @ w2 + b2); drop them here.
    if b_pad != B:
        return out_padded[:B]
    return out_padded


def init_params(key, input_size, hidden_size, output_size, dtype=jnp.float32):
    """Deterministic init mimicking nn.Linear's uniform(-1/sqrt(fan_in), 1/sqrt(fan_in))."""
    k1, k2, k3, k4 = jax.random.split(key, 4)
    bound1 = 1.0 / jnp.sqrt(input_size)
    bound2 = 1.0 / jnp.sqrt(hidden_size)
    w1 = jax.random.uniform(k1, (input_size, hidden_size), dtype, -bound1, bound1)
    b1 = jax.random.uniform(k2, (hidden_size,), dtype, -bound1, bound1)
    w2 = jax.random.uniform(k3, (hidden_size, output_size), dtype, -bound2, bound2)
    b2 = jax.random.uniform(k4, (output_size,), dtype, -bound2, bound2)
    return w1, b1, w2, b2


# TODO(synk): Linear_QNet.save() (torch.save checkpoint I/O) has no in-kernel
# equivalent and is intentionally not translated.

if __name__ == "__main__":
    # Small shapes consistent with the module (snake-game Q-net style sizes).
    batch, input_size, hidden_size, output_size = 2, 11, 32, 3

    key = jax.random.PRNGKey(0)
    kx, kb, kc, kp = jax.random.split(key, 4)
    w1, b1, w2, b2 = init_params(kp, input_size, hidden_size, output_size)

    def ref_fwd(xx):
        return jnp.maximum(xx @ w1 + b1, 0.0) @ w2 + b2

    # --- 1) Tiny batch, Pallas kernel forced (single grid step, f32). -------
    x = jax.random.normal(kx, (batch, input_size), dtype=jnp.float32)
    out = jax.block_until_ready(
        linear_qnet_forward(x, w1, b1, w2, b2, force_pallas=True))
    assert out.shape == (batch, output_size)
    assert jnp.allclose(out, ref_fwd(x), atol=1e-5, rtol=1e-5)

    # --- 2) Mid-size batch, f32: 2 "parallel" grid steps (v7x 2-TC split). --
    xb = jax.random.normal(kb, (600, input_size), dtype=jnp.float32)
    out_mid = jax.block_until_ready(linear_qnet_forward(xb, w1, b1, w2, b2))
    assert out_mid.shape == (600, output_size)
    assert jnp.allclose(out_mid, ref_fwd(xb), atol=1e-5, rtol=1e-5)

    # --- 3) Mid-size batch, bf16 matmul operands (v6e/v7x MXU path). --------
    out_bf16 = jax.block_until_ready(
        linear_qnet_forward(xb, w1, b1, w2, b2, param_dtype=jnp.bfloat16))
    assert out_bf16.shape == (600, output_size)
    assert jnp.allclose(out_bf16, ref_fwd(xb), atol=5e-2, rtol=5e-2)

    # --- 4) Larger ragged batch, f32: block_b tiling + row-only padding. ----
    xc = jax.random.normal(kc, (2500, input_size), dtype=jnp.float32)
    out_big = jax.block_until_ready(linear_qnet_forward(xc, w1, b1, w2, b2))
    assert out_big.shape == (2500, output_size)
    assert jnp.allclose(out_big, ref_fwd(xc), atol=1e-5, rtol=1e-5)

    print("KERNEL_OK")
</pallas_src>

<mosaic_0001>
module attributes {stable_mosaic.version = 11 : i64} {
  func.func @_qnet_kernel(%arg0: i32, %arg1: memref<8x11xf32, #tpu.memory_space<vmem>>, %arg2: memref<11x32xf32, #tpu.memory_space<vmem>>, %arg3: memref<1x32xf32, #tpu.memory_space<vmem>>, %arg4: memref<32x3xf32, #tpu.memory_space<vmem>>, %arg5: memref<1x3xf32, #tpu.memory_space<vmem>>, %arg6: memref<8x3xf32, #tpu.memory_space<vmem>>) attributes {dimension_semantics = [#tpu.dimension_semantics<parallel>], iteration_bounds = array<i64: 1>, scalar_prefetch = 0 : i64, scratch_operands = 0 : i64, tpu.core_type = #tpu.core_type<tc>, window_params = [{transform_indices = @transform_0, window_bounds = array<i64: 8, 11>}, {pipeline_mode = #tpu.pipeline_mode<synchronous>, transform_indices = @transform_1, window_bounds = array<i64: 11, 32>}, {pipeline_mode = #tpu.pipeline_mode<synchronous>, transform_indices = @transform_2, window_bounds = array<i64: 1, 32>}, {pipeline_mode = #tpu.pipeline_mode<synchronous>, transform_indices = @transform_3, window_bounds = array<i64: 32, 3>}, {pipeline_mode = #tpu.pipeline_mode<synchronous>, transform_indices = @transform_4, window_bounds = array<i64: 1, 3>}, {transform_indices = @transform_5, window_bounds = array<i64: 8, 3>}]} {
    %c0 = arith.constant 0 : index
    %c0_0 = arith.constant 0 : index
    %0 = vector.load %arg1[%c0, %c0_0] : memref<8x11xf32, #tpu.memory_space<vmem>>, vector<8x11xf32>
    %c0_1 = arith.constant 0 : index
    %c0_2 = arith.constant 0 : index
    %1 = vector.load %arg2[%c0_1, %c0_2] : memref<11x32xf32, #tpu.memory_space<vmem>>, vector<11x32xf32>
    %cst = arith.constant dense<0.000000e+00> : vector<8x32xf32>
    %2 = tpu.matmul %0, %1, %cst {dimension_numbers = #tpu.dot_dimension_numbers<[1], [0], [0], [1], [0, 0, 1, 1], [], []>} : vector<8x11xf32>, vector<11x32xf32>, vector<8x32xf32> -> vector<8x32xf32>
    %c0_3 = arith.constant 0 : index
    %c0_4 = arith.constant 0 : index
    %3 = vector.load %arg3[%c0_3, %c0_4] : memref<1x32xf32, #tpu.memory_space<vmem>>, vector<1x32xf32>
    %4 = vector.broadcast %3 : vector<1x32xf32> to vector<8x32xf32>
    %5 = arith.addf %2, %4 : vector<8x32xf32>
    %cst_5 = arith.constant 0.000000e+00 : f32
    %6 = vector.broadcast %cst_5 : f32 to vector<8x32xf32>
    %7 = arith.maximumf %5, %6 : vector<8x32xf32>
    %c0_6 = arith.constant 0 : index
    %c0_7 = arith.constant 0 : index
    %8 = vector.load %arg4[%c0_6, %c0_7] : memref<32x3xf32, #tpu.memory_space<vmem>>, vector<32x3xf32>
    %cst_8 = arith.constant dense<0.000000e+00> : vector<8x3xf32>
    %9 = tpu.matmul %7, %8, %cst_8 {dimension_numbers = #tpu.dot_dimension_numbers<[1], [0], [0], [1], [0, 0, 1, 1], [], []>} : vector<8x32xf32>, vector<32x3xf32>, vector<8x3xf32> -> vector<8x3xf32>
    %c0_9 = arith.constant 0 : index
    %c0_10 = arith.constant 0 : index
    %10 = vector.load %arg5[%c0_9, %c0_10] : memref<1x3xf32, #tpu.memory_space<vmem>>, vector<1x3xf32>
    %11 = vector.broadcast %10 : vector<1x3xf32> to vector<8x3xf32>
    %12 = arith.addf %9, %11 : vector<8x3xf32>
    %c0_11 = arith.constant 0 : index
    %c0_12 = arith.constant 0 : index
    %13 = vector.load %arg6[%c0_11, %c0_12] : memref<8x3xf32, #tpu.memory_space<vmem>>, vector<8x3xf32>
    tpu.vector_store %arg6[%c0_11, %c0_12], %12 {strides = array<i32>} : memref<8x3xf32, #tpu.memory_space<vmem>>, vector<8x3xf32>,
    return
  }
  func.func @transform_0(%arg0: i32) -> (i32, i32) {
    %c0_i32 = arith.constant 0 : i32
    %c0_i32_0 = arith.constant 0 : i32
    return %arg0, %c0_i32 : i32, i32
  }
  func.func @transform_1(%arg0: i32) -> (i32, i32) {
    %c0_i32 = arith.constant 0 : i32
    %c0_i32_0 = arith.constant 0 : i32
    %c0_i32_1 = arith.constant 0 : i32
    return %c0_i32, %c0_i32_0 : i32, i32
  }
  func.func @transform_2(%arg0: i32) -> (i32, i32) {
    %c0_i32 = arith.constant 0 : i32
    %c0_i32_0 = arith.constant 0 : i32
    %c0_i32_1 = arith.constant 0 : i32
    return %c0_i32, %c0_i32_0 : i32, i32
  }
  func.func @transform_3(%arg0: i32) -> (i32, i32) {
    %c0_i32 = arith.constant 0 : i32
    %c0_i32_0 = arith.constant 0 : i32
    %c0_i32_1 = arith.constant 0 : i32
    return %c0_i32, %c0_i32_0 : i32, i32
  }
  func.func @transform_4(%arg0: i32) -> (i32, i32) {
    %c0_i32 = arith.constant 0 : i32
    %c0_i32_0 = arith.constant 0 : i32
    %c0_i32_1 = arith.constant 0 : i32
    return %c0_i32, %c0_i32_0 : i32, i32
  }
  func.func @transform_5(%arg0: i32) -> (i32, i32) {
    %c0_i32 = arith.constant 0 : i32
    %c0_i32_0 = arith.constant 0 : i32
    return %arg0, %c0_i32 : i32, i32
  }
}

</mosaic_0001>

<llo_original>
// kernel: tpu_custom_call.1
$region0: #{tpu_custom_call.1}
  #allocation0 [shape = 'u32[]', space=smem, size = 0x4, offset = 0x4, fixed_abs, tag = 'smem constant byte address 0x4 - core index']
  #allocation1 [shape = 'u32[144,128]{1,0:T(1,128)}', space=vmem, size = 0x12000, scoped, tag = 'internal scratch']
  %s0 = inlined_call_operand.vmem [shape: f32[8,11], index: 0, kind: input, shape index: {}]
  %s1 = inlined_call_operand.vmem [shape: f32[11,32], index: 1, kind: input, shape index: {}]
  %s2 = inlined_call_operand.vmem [shape: f32[1,32], index: 2, kind: input, shape index: {}]
  %s3 = inlined_call_operand.vmem [shape: f32[32,3], index: 3, kind: input, shape index: {}]
  %s4 = inlined_call_operand.vmem [shape: f32[1,3], index: 4, kind: input, shape index: {}]
  %s5 = inlined_call_operand.vmem [shape: f32[8,3], index: 5, kind: output, shape index: {}]
  %s6 = sld [smem:[#allocation0]]
  $region30: #{tpu_custom_call.1} parent=0
    _
  %s8 = ssub.s32 1, %s6
  %s9 = scalar_select 0, %s8, %s6
  // Predicated region
  $region2: #{tpu_custom_call.1} parent=0 // pred_check
    _
  $region3: #{tpu_custom_call.1} parent=0 // pred_check_branch
    %11 = sbr.rel (0) target = $region5
  $region4: #{tpu_custom_call.1} parent=0 // pred_region
    _
  $region5: #{tpu_custom_call.1} parent=0 // pred_fallthru
    _
  // Predicated region
  $region6: #{tpu_custom_call.1} parent=0 // pred_check
    _
  $region7: #{tpu_custom_call.1} parent=0 // pred_check_branch
    %13 = sbr.rel (0) target = $region9
  $region8: #{tpu_custom_call.1} parent=0 // pred_region
    _
  $region9: #{tpu_custom_call.1} parent=0 // pred_fallthru
    _
  // Predicated region
  $region10: #{tpu_custom_call.1} parent=0 // pred_check
    _
  $region11: #{tpu_custom_call.1} parent=0 // pred_check_branch
    %15 = sbr.rel (0) target = $region13
  $region12: #{tpu_custom_call.1} parent=0 // pred_region
    _
  $region13: #{tpu_custom_call.1} parent=0 // pred_fallthru
    _
  // Predicated region
  $region14: #{tpu_custom_call.1} parent=0 // pred_check
    _
  $region15: #{tpu_custom_call.1} parent=0 // pred_check_branch
    %17 = sbr.rel (0) target = $region17
  $region16: #{tpu_custom_call.1} parent=0 // pred_region
    _
  $region17: #{tpu_custom_call.1} parent=0 // pred_fallthru
    _
  // Predicated region
  $region18: #{tpu_custom_call.1} parent=0 // pred_check
    _
  $region19: #{tpu_custom_call.1} parent=0 // pred_check_branch
    %19 = sbr.rel (0) target = $region21
  $region20: #{tpu_custom_call.1} parent=0 // pred_region
    _
  $region21: #{tpu_custom_call.1} parent=0 // pred_fallthru
    _
  %v20 = vld [vmem:[%s0] sm:$0xff]
  %v21 = vld [vmem:[%s1] sm:$0xff]
  %v22 = vld [vmem:[%s1 + $0x8] sm:$0x7]
  %v23 = vld [vmem:[%s2] sm:$0x1]
  %v25 = vlaneseq
  %v26 = vshrl.u32 %v25, 7
  %v27 = vsub.s32 0, %v26
  %v28 = vrot.slane %v23, %v27
  %vm30 = vcmask 89088
  %v32 = vsel %vm30, %v20, 0
  %vm34 = vcmask 1042432
  %v36 = vsel %vm34, %v22, 0
  %38 = vmatprep.subr.mxu0 0.0
  %39 = vmatpush1.msra.mxu0 0.0
  %40 = vmatprep.subr.mxu0 0.0
  %41 = vmatpush1.msra.mxu0 0.0
  %42 = vmatprep.subr.mxu0 0.0
  %43 = vmatpush1.msra.mxu0 0.0
  %44 = vmatprep.subr.mxu0 0.0
  %45 = vmatpush1.msra.mxu0 0.0
  %46 = vmatprep.subr.mxu0 0.0
  %47 = vmatpush1.msra.mxu0 0.0
  %48 = vmatprep.subr.mxu0 0.0
  %49 = vmatpush1.msra.mxu0 0.0
  %50 = vmatprep.subr.mxu0 0.0
  %51 = vmatpush1.msra.mxu0 0.0
  %52 = vmatprep.subr.mxu0 0.0
  %53 = vmatpush1.msra.mxu0 0.0
  %54 = vmatprep.subr.mxu0 0.0
  %55 = vmatpush1.msra.mxu0 0.0
  %56 = vmatprep.subr.mxu0 0.0
  %57 = vmatpush1.msra.mxu0 0.0
  %58 = vmatprep.subr.mxu0 0.0
  %59 = vmatpush1.msra.mxu0 0.0
  %60 = vmatprep.subr.mxu0 0.0
  %61 = vmatpush1.msra.mxu0 0.0
  %62 = vmatprep.subr.mxu0 0.0
  %63 = vmatpush1.msra.mxu0 0.0
  %64 = vmatprep.subr.mxu0 0.0
  %65 = vmatpush1.msra.mxu0 0.0
  %66 = vmatprep.subr.mxu0 0.0
  %67 = vmatpush1.msra.mxu0 %v36
  %68 = vmatprep.subr.mxu0 0.0
  %69 = vmatpush1.msra.mxu0 %v21
  %70 = vmatprep.subr.mxu0 0.0
  %71 = vmatpush2.msra.mxu0 0.0
  %72 = vmatprep.subr.mxu0 0.0
  %73 = vmatpush2.msra.mxu0 0.0
  %74 = vmatprep.subr.mxu0 0.0
  %75 = vmatpush2.msra.mxu0 0.0
  %76 = vmatprep.subr.mxu0 0.0
  %77 = vmatpush2.msra.mxu0 0.0
  %78 = vmatprep.subr.mxu0 0.0
  %79 = vmatpush2.msra.mxu0 0.0
  %80 = vmatprep.subr.mxu0 0.0
  %81 = vmatpush2.msra.mxu0 0.0
  %82 = vmatprep.subr.mxu0 0.0
  %83 = vmatpush2.msra.mxu0 0.0
  %84 = vmatprep.subr.mxu0 0.0
  %85 = vmatpush2.msra.mxu0 0.0
  %86 = vmatprep.subr.mxu0 0.0
  %87 = vmatpush2.msra.mxu0 0.0
  %88 = vmatprep.subr.mxu0 0.0
  %89 = vmatpush2.msra.mxu0 0.0
  %90 = vmatprep.subr.mxu0 0.0
  %91 = vmatpush2.msra.mxu0 0.0
  %92 = vmatprep.subr.mxu0 0.0
  %93 = vmatpush2.msra.mxu0 0.0
  %94 = vmatprep.subr.mxu0 0.0
  %95 = vmatpush2.msra.mxu0 0.0
  %96 = vmatprep.subr.mxu0 0.0
  %97 = vmatpush2.msra.mxu0 0.0
  %98 = vmatprep.subr.mxu0 0.0
  %99 = vmatpush2.msra.mxu0 0.0
  %100 = vmatprep.subr.mxu0 0.0
  %101 = vmatpush2.msra.mxu0 0.0
  %102 = vmatprep.mubr.f32.mxu0 0.0
  %103 = vmatmul.mubr.f32.gmra.mxu0 %v32
  %v104 = vpop.f32.mrf.mxu0
  %v105 = vadd.f32 %v28, %v104
  %v106 = vpop.f32.mrf.mxu0
  %107 = vdwg.mxu0
  %v108 = vmax.f32 %v105, 0.0
  %v109 = vld [vmem:[%s3] sm:$0xff]
  %v110 = vld [vmem:[%s3 + $0x8] sm:$0xff]
  %v111 = vld [vmem:[%s3 + $0x10] sm:$0xff]
  %v112 = vld [vmem:[%s3 + $0x18] sm:$0xff]
  %v113 = vld [vmem:[%s4] sm:$0x1]
  %v115 = vlaneseq
  %v116 = vshrl.u32 %v115, 7
  %v117 = vsub.s32 0, %v116
  %v118 = vrot.slane %v113, %v117
  %vm120 = vcmask 261120
  %v122 = vsel %vm120, %v108, 0
  %124 = vmatprep.subr.mxu0 0.0
  %125 = vmatpush1.msra.mxu0 0.0
  %126 = vmatprep.subr.mxu0 0.0
  %127 = vmatpush1.msra.mxu0 0.0
  %128 = vmatprep.subr.mxu0 0.0
  %129 = vmatpush1.msra.mxu0 0.0
  %130 = vmatprep.subr.mxu0 0.0
  %131 = vmatpush1.msra.mxu0 0.0
  %132 = vmatprep.subr.mxu0 0.0
  %133 = vmatpush1.msra.mxu0 0.0
  %134 = vmatprep.subr.mxu0 0.0
  %135 = vmatpush1.msra.mxu0 0.0
  %136 = vmatprep.subr.mxu0 0.0
  %137 = vmatpush1.msra.mxu0 0.0
  %138 = vmatprep.subr.mxu0 0.0
  %139 = vmatpush1.msra.mxu0 0.0
  %140 = vmatprep.subr.mxu0 0.0
  %141 = vmatpush1.msra.mxu0 0.0
  %142 = vmatprep.subr.mxu0 0.0
  %143 = vmatpush1.msra.mxu0 0.0
  %144 = vmatprep.subr.mxu0 0.0
  %145 = vmatpush1.msra.mxu0 0.0
  %146 = vmatprep.subr.mxu0 0.0
  %147 = vmatpush1.msra.mxu0 0.0
  %148 = vmatprep.subr.mxu0 0.0
  %149 = vmatpush1.msra.mxu0 %v112
  %150 = vmatprep.subr.mxu0 0.0
  %151 = vmatpush1.msra.mxu0 %v111
  %152 = vmatprep.subr.mxu0 0.0
  %153 = vmatpush1.msra.mxu0 %v110
  %154 = vmatprep.subr.mxu0 0.0
  %155 = vmatpush1.msra.mxu0 %v109
  %156 = vmatprep.subr.mxu0 0.0
  %157 = vmatpush2.msra.mxu0 0.0
  %158 = vmatprep.subr.mxu0 0.0
  %159 = vmatpush2.msra.mxu0 0.0
  %160 = vmatprep.subr.mxu0 0.0
  %161 = vmatpush2.msra.mxu0 0.0
  %162 = vmatprep.subr.mxu0 0.0
  %163 = vmatpush2.msra.mxu0 0.0
  %164 = vmatprep.subr.mxu0 0.0
  %165 = vmatpush2.msra.mxu0 0.0
  %166 = vmatprep.subr.mxu0 0.0
  %167 = vmatpush2.msra.mxu0 0.0
  %168 = vmatprep.subr.mxu0 0.0
  %169 = vmatpush2.msra.mxu0 0.0
  %170 = vmatprep.subr.mxu0 0.0
  %171 = vmatpush2.msra.mxu0 0.0
  %172 = vmatprep.subr.mxu0 0.0
  %173 = vmatpush2.msra.mxu0 0.0
  %174 = vmatprep.subr.mxu0 0.0
  %175 = vmatpush2.msra.mxu0 0.0
  %176 = vmatprep.subr.mxu0 0.0
  %177 = vmatpush2.msra.mxu0 0.0
  %178 = vmatprep.subr.mxu0 0.0
  %179 = vmatpush2.msra.mxu0 0.0
  %180 = vmatprep.subr.mxu0 0.0
  %181 = vmatpush2.msra.mxu0 0.0
  %182 = vmatprep.subr.mxu0 0.0
  %183 = vmatpush2.msra.mxu0 0.0
  %184 = vmatprep.subr.mxu0 0.0
  %185 = vmatpush2.msra.mxu0 0.0
  %186 = vmatprep.subr.mxu0 0.0
  %187 = vmatpush2.msra.mxu0 0.0
  %188 = vmatprep.mubr.f32.mxu0 0.0
  %189 = vmatmul.mubr.f32.gmra.mxu0 %v122
  %v190 = vpop.f32.mrf.mxu0
  %v191 = vadd.f32 %v118, %v190
  %v192 = vpop.f32.mrf.mxu0
  %193 = vdwg.mxu0
  %vm194 = vcmask 23552
  %195 = vst.msk [vmem:[%s5] sm:$0xff] %vm194, %v191
  // Predicated region
  $region22: #{tpu_custom_call.1} parent=0 // pred_check
    _
  $region23: #{tpu_custom_call.1} parent=0 // pred_check_branch
    %197 = sbr.rel (0) target = $region25
  $region24: #{tpu_custom_call.1} parent=0 // pred_region
    _
  $region25: #{tpu_custom_call.1} parent=0 // pred_fallthru
    _
  // Predicated region
  $region26: #{tpu_custom_call.1} parent=0 // pred_check
    _
  $region27: #{tpu_custom_call.1} parent=0 // pred_check_branch
    %199 = sbr.rel (0) target = $region29
  $region28: #{tpu_custom_call.1} parent=0 // pred_region
    _
  $region29: #{tpu_custom_call.1} parent=0 // pred_fallthru
    _

</llo_original>
